<compile_context>
chip_gen: v5e
topology: v5e:2x2
jax: 0.10.0
libtpu: 0.0.40
codegen_flags: <defaults>
</compile_context>

<pallas_src>
import math

import jax
import jax.numpy as jnp
from jax import lax
from jax.experimental import pallas as pl
from jax.experimental.pallas import tpu as pltpu


# ---------------------------------------------------------------------------
# Weight -> flattened-operator construction (wrapper-side, weights only, f32).
# Convention: activation is a row vector a with a[i*s + j] = X[i, j]; a linear
# image op  X -> A.T @ X @ B  becomes  a -> a @ kron(A, B).
# ---------------------------------------------------------------------------
def _conv3x3_op(s, w33):
    """(s*s, s*s) operator of Conv2d(1,1,3,padding='same') (cross-correlation)."""
    op = jnp.zeros((s * s, s * s), jnp.float32)
    for p in range(3):
        sp = jnp.eye(s, k=1 - p, dtype=jnp.float32)      # row shift by (p-1)
        for q in range(3):
            sq = jnp.eye(s, k=1 - q, dtype=jnp.float32)  # col shift by (q-1)
            op = op + w33[p, q] * jnp.kron(sp, sq)
    return op


def _avgpool2_matrix(s):
    """(s//2, s) 1-D pooling matrix; AdaptiveAvgPool2d(s//2) == 2x2 mean (even s)."""
    idx = jnp.arange(s // 2)
    pm = jnp.zeros((s // 2, s), jnp.float32)
    pm = pm.at[idx, 2 * idx].set(0.5)
    pm = pm.at[idx, 2 * idx + 1].set(0.5)
    return pm


def _pool2_op(s):
    pm = _avgpool2_matrix(s)
    return jnp.kron(pm.T, pm.T)                          # (s*s, (s//2)^2)


def _bilinear_up2_matrix(s_in):
    """(2*s_in, s_in) matrix of Upsample(scale=2, bilinear, align_corners=False)."""
    rows = []
    for io in range(2 * s_in):
        src = max((io + 0.5) / 2.0 - 0.5, 0.0)
        i0 = int(math.floor(src))
        lam = src - i0
        i1 = min(i0 + 1, s_in - 1)
        row = [0.0] * s_in
        row[i0] += 1.0 - lam
        row[i1] += lam
        rows.append(row)
    return jnp.array(rows, jnp.float32)


def _up2_op(s_in):
    um = _bilinear_up2_matrix(s_in)
    return jnp.kron(um.T, um.T)                          # (s_in^2, 4*s_in^2)


def _linear_op(w):
    """nn.Linear over the LAST spatial dim of an (.., s, s) map: x -> x @ w.T."""
    s = w.shape[0]
    return jnp.kron(jnp.eye(s, dtype=jnp.float32), w.T)  # (s*s, s*s)


def _linear_bias(b, s):
    return jnp.tile(b, s)[None, :]                       # bias_flat[i*s + j] = b[j]


def _build_fused_operators(p, n, depth, dtype):
    """Compose adjacent linear stages into one operator per stage (f32), then
    cast matrices to `dtype`.  Returned arg order must match the kernel."""
    sizes = [n >> i for i in range(depth + 1)]
    w33 = p["w_conv"][0, 0]                               # shared 3x3 kernel
    bconv = p["b_conv"][0]
    conv_ops = [_conv3x3_op(s, w33) for s in sizes[:depth]]

    # ---- down path: Linear_i ∘ conv1 fused -------------------------------
    down_mats, down_biases, pool_mats = [], [], []
    for i in range(depth):
        s = sizes[i]
        lin = _linear_op(p["w_down"][i])
        dc = lin @ conv_ops[i]                                        # Linear then conv1
        dcb = _linear_bias(p["b_down"][i], s) @ conv_ops[i] + bconv   # fused bias row
        down_mats.append(dc)
        down_biases.append(dcb)
        pool_mats.append(_pool2_op(s))

    # ---- fold convInput (1x1, 2->1) + initial conv1 into level 0, stack x|y
    wx = p["w_in"][0, 0, 0, 0]
    wy = p["w_in"][0, 1, 0, 0]
    c0 = conv_ops[0]
    pre_b = p["b_in"][0] * jnp.sum(c0, axis=0, keepdims=True) + bconv  # bias after conv1
    c0_dc0 = c0 @ down_mats[0]
    down_biases[0] = pre_b @ down_mats[0] + down_biases[0]
    down_mats[0] = jnp.concatenate([wx * c0_dc0, wy * c0_dc0], axis=0)  # (2n^2, n^2)

    # ---- bottom -----------------------------------------------------------
    bot_mat = _linear_op(p["w_bot"])
    bot_b = _linear_bias(p["b_bot"], sizes[depth])

    # ---- up path: Upsample_x2 ∘ conv1 ∘ Linear_i fused --------------------
    up_mats, up_biases = [], []
    for i in range(depth):
        s = sizes[i]
        lin = _linear_op(p["w_up"][i])
        upf = _up2_op(sizes[i + 1]) @ conv_ops[i] @ lin               # (s^2/4, s^2)
        upb = bconv * jnp.sum(lin, axis=0, keepdims=True) + _linear_bias(p["b_up"][i], s)
        up_mats.append(upf)
        up_biases.append(upb)

    args = []
    for i in range(depth):
        args += [down_mats[i].astype(dtype), down_biases[i], pool_mats[i].astype(dtype)]
    args += [bot_mat.astype(dtype), bot_b]
    for i in range(depth):
        args += [up_mats[i].astype(dtype), up_biases[i]]
    return args


# ---------------------------------------------------------------------------
# Kernel: one batch tile per grid step; everything is (bt, K) @ (K, N) on MXU.
# Arg order: xy, [down_mat, down_bias, pool]*depth, bot_mat, bot_bias,
#            [up_mat, up_bias]*depth, out, then `depth` VMEM scratch refs.
# ---------------------------------------------------------------------------
def _make_unet_kernel(depth):
    def kernel(*refs):
        xy_ref = refs[0]
        pos = 1
        down = [refs[pos + 3 * i: pos + 3 * (i + 1)] for i in range(depth)]
        pos += 3 * depth
        bot_w_ref, bot_b_ref = refs[pos], refs[pos + 1]
        pos += 2
        up = [refs[pos + 2 * i: pos + 2 * (i + 1)] for i in range(depth)]
        pos += 2 * depth
        out_ref = refs[pos]
        res = refs[pos + 1: pos + 1 + depth]          # VMEM scratch (skip tensors)

        def mm(a, w_ref):
            # bf16 (or f32) MXU matmul with f32 accumulation.
            return jnp.dot(a.astype(w_ref.dtype), w_ref[...],
                           preferred_element_type=jnp.float32)

        a = xy_ref[...]
        for i in range(depth):                         # down path
            w_r, b_r, pool_r = down[i]
            a = mm(a, w_r) + b_r[...]                  # fused (convInput+)conv1+Linear
            res[i][...] = a                            # skip tensor -> VMEM scratch
            a = jnp.maximum(mm(a, pool_r), 0.0)        # 2x2 avg pool, ReLU

        a = jnp.maximum(mm(a, bot_w_ref) + bot_b_ref[...], 0.0)   # bottom Linear

        for i in range(depth - 1, -1, -1):             # up path
            w_r, b_r = up[i]
            a = mm(a, w_r) + b_r[...] + res[i][...]    # fused up∘conv1∘Linear + skip
            a = jnp.maximum(a, 0.0)

        # Sigmoid: exp + reciprocal ride the EUP slot (approx rcp is plenty).
        out_ref[...] = pl.reciprocal(1.0 + jnp.exp(-a), approx=True)

    return kernel


def _round_up(v, m):
    return ((v + m - 1) // m) * m


def _default_batch_tile():
    # v6e / v7x MXU is 256x256 -> bt=256 fills the M axis; v5e MXU is 128x128.
    try:
        kind = jax.devices()[0].device_kind.lower()
        if "v5 lite" in kind or "v5e" in kind or "v5litepod" in kind:
            return 128
    except Exception:
        pass
    return 256


def unet2d_refiner_forward(x, y, p, depth, batch_tile=None,
                           compute_dtype=jnp.bfloat16):
    """x, y: (B, n, n) float32.  Returns the (B, n, n) sigmoid output."""
    B, n, _ = x.shape
    assert n % (1 << depth) == 0, "n must be divisible by 2^depth (even at every level)"
    n2 = n * n

    if batch_tile is None:
        batch_tile = _default_batch_tile()

    # Batch tile: multiple of 16 (bf16 sublane packing).  For large batches
    # cap bt so the grid has >= 2 steps -> the "parallel" axis shards across
    # both TensorCores on v7x.
    bt = min(batch_tile, _round_up(B, 16))
    if B > batch_tile:
        bt = min(bt, _round_up(-(-B // 2), 16))
    b_pad = _round_up(B, bt)

    # Single streamed input: x|y concatenated on the lane axis, cast once.
    xy = jnp.concatenate([x.reshape(B, n2), y.reshape(B, n2)], axis=-1)
    xy = jnp.pad(xy.astype(compute_dtype), ((0, b_pad - B), (0, 0)))

    ops = _build_fused_operators(p, n, depth, compute_dtype)
    sizes = [n >> i for i in range(depth + 1)]

    in_specs = [pl.BlockSpec((bt, 2 * n2), lambda b: (b, 0))]
    # Weight operands: full-array blocks, constant index_map -> VMEM-resident.
    in_specs += [pl.BlockSpec(o.shape, lambda b: (0, 0)) for o in ops]

    out = pl.pallas_call(
        _make_unet_kernel(depth),
        out_shape=jax.ShapeDtypeStruct((b_pad, n2), jnp.float32),
        grid=(b_pad // bt,),
        in_specs=in_specs,
        out_specs=pl.BlockSpec((bt, n2), lambda b: (b, 0)),
        scratch_shapes=[pltpu.VMEM((bt, s * s), jnp.float32)
                        for s in sizes[:depth]],
        compiler_params=pltpu.CompilerParams(
            dimension_semantics=("parallel",)),
    )(xy, *ops)
    return out[:B].reshape(B, n, n)


# ---------------------------------------------------------------------------
# Pure-JAX reference matching the PyTorch module semantics (f32).
# ---------------------------------------------------------------------------
def _conv2d_same(x, w, b):
    y = lax.conv_general_dilated(
        x, w, window_strides=(1, 1), padding="SAME",
        dimension_numbers=("NCHW", "OIHW", "NCHW"))
    return y + b[None, :, None, None]


def unet2d_refiner_reference(x, y, p, depth):
    a = jnp.concatenate([x[:, None], y[:, None]], axis=1)          # (B,2,n,n)
    a = _conv2d_same(a, p["w_in"], p["b_in"])                      # convInput
    a = _conv2d_same(a, p["w_conv"], p["b_conv"])                  # conv1
    reserve = []
    for i in range(depth):
        a = jnp.einsum("bchw,jw->bchj", a, p["w_down"][i]) + p["b_down"][i]
        a = _conv2d_same(a, p["w_conv"], p["b_conv"])
        reserve.append(a)
        bsz, c, h, w = a.shape
        a = a.reshape(bsz, c, h // 2, 2, w // 2, 2).mean(axis=(3, 5))
        a = jax.nn.relu(a)
    a = jnp.einsum("bchw,jw->bchj", a, p["w_bot"]) + p["b_bot"]
    a = jax.nn.relu(a)
    for i in range(depth - 1, -1, -1):
        um = _bilinear_up2_matrix(a.shape[-1])
        a = jnp.einsum("pi,bcij,qj->bcpq", um, a, um)              # Upsample x2
        a = _conv2d_same(a, p["w_conv"], p["b_conv"])
        a = jnp.einsum("bchw,jw->bchj", a, p["w_up"][i]) + p["b_up"][i]
        a = a + reserve[i]
        a = jax.nn.relu(a)
    return jax.nn.sigmoid(a)[:, 0]                                 # squeeze


if __name__ == "__main__":
    n, depth, B = 16, 2, 2
    sizes = [n >> i for i in range(depth + 1)]                     # [16, 8, 4]

    key = jax.random.PRNGKey(0)
    kit = iter(jax.random.split(key, 8 + 4 * depth))

    x = jax.random.normal(next(kit), (B, n, n), jnp.float32)
    y = jax.random.normal(next(kit), (B, n, n), jnp.float32)

    p = {
        "w_in":   0.5 * jax.random.normal(next(kit), (1, 2, 1, 1), jnp.float32),
        "b_in":   0.1 * jax.random.normal(next(kit), (1,), jnp.float32),
        "w_conv": 0.3 * jax.random.normal(next(kit), (1, 1, 3, 3), jnp.float32),
        "b_conv": 0.1 * jax.random.normal(next(kit), (1,), jnp.float32),
        "w_down": [], "b_down": [], "w_up": [], "b_up": [],
    }
    for s in sizes[:depth]:
        p["w_down"].append(0.2 * jax.random.normal(next(kit), (s, s), jnp.float32))
        p["b_down"].append(0.1 * jax.random.normal(next(kit), (s,), jnp.float32))
        p["w_up"].append(0.2 * jax.random.normal(next(kit), (s, s), jnp.float32))
        p["b_up"].append(0.1 * jax.random.normal(next(kit), (s,), jnp.float32))
    sd = sizes[depth]
    p["w_bot"] = 0.2 * jax.random.normal(next(kit), (sd, sd), jnp.float32)
    p["b_bot"] = 0.1 * jax.random.normal(next(kit), (sd,), jnp.float32)

    ref = unet2d_refiner_reference(x, y, p, depth)

    # Main (bf16 MXU) path.
    out = unet2d_refiner_forward(x, y, p, depth)
    out = jax.block_until_ready(out)
    assert out.shape == (B, n, n), out.shape
    err_bf16 = jnp.max(jnp.abs(out - ref))
    assert jnp.allclose(out, ref, atol=2e-2, rtol=2e-2), \
        f"bf16 max abs diff = {err_bf16}"

    # Tight correctness check of the fused-operator kernel itself (f32 path).
    out_f32 = unet2d_refiner_forward(x, y, p, depth, compute_dtype=jnp.float32)
    out_f32 = jax.block_until_ready(out_f32)
    err_f32 = jnp.max(jnp.abs(out_f32 - ref))
    assert jnp.allclose(out_f32, ref, atol=3e-3, rtol=3e-3), \
        f"f32 max abs diff = {err_f32}"

    print("KERNEL_OK")
</pallas_src>

<mosaic_0001>
module attributes {stable_mosaic.version = 11 : i64} {
  func.func @kernel(%arg0: i32, %arg1: memref<16x512xbf16, #tpu.memory_space<vmem>>, %arg2: memref<512x256xbf16, #tpu.memory_space<vmem>>, %arg3: memref<1x256xf32, #tpu.memory_space<vmem>>, %arg4: memref<256x64xbf16, #tpu.memory_space<vmem>>, %arg5: memref<64x64xbf16, #tpu.memory_space<vmem>>, %arg6: memref<1x64xf32, #tpu.memory_space<vmem>>, %arg7: memref<64x16xbf16, #tpu.memory_space<vmem>>, %arg8: memref<16x16xbf16, #tpu.memory_space<vmem>>, %arg9: memref<1x16xf32, #tpu.memory_space<vmem>>, %arg10: memref<64x256xbf16, #tpu.memory_space<vmem>>, %arg11: memref<1x256xf32, #tpu.memory_space<vmem>>, %arg12: memref<16x64xbf16, #tpu.memory_space<vmem>>, %arg13: memref<1x64xf32, #tpu.memory_space<vmem>>, %arg14: memref<16x256xf32, #tpu.memory_space<vmem>>, %arg15: memref<16x256xf32, #tpu.memory_space<vmem>>, %arg16: memref<16x64xf32, #tpu.memory_space<vmem>>) attributes {dimension_semantics = [#tpu.dimension_semantics<parallel>], iteration_bounds = array<i64: 1>, scalar_prefetch = 0 : i64, scratch_operands = 2 : i64, tpu.core_type = #tpu.core_type<tc>, window_params = [{transform_indices = @transform_0, window_bounds = array<i64: 16, 512>}, {pipeline_mode = #tpu.pipeline_mode<synchronous>, transform_indices = @transform_1, window_bounds = array<i64: 512, 256>}, {pipeline_mode = #tpu.pipeline_mode<synchronous>, transform_indices = @transform_2, window_bounds = array<i64: 1, 256>}, {pipeline_mode = #tpu.pipeline_mode<synchronous>, transform_indices = @transform_3, window_bounds = array<i64: 256, 64>}, {pipeline_mode = #tpu.pipeline_mode<synchronous>, transform_indices = @transform_4, window_bounds = array<i64: 64, 64>}, {pipeline_mode = #tpu.pipeline_mode<synchronous>, transform_indices = @transform_5, window_bounds = array<i64: 1, 64>}, {pipeline_mode = #tpu.pipeline_mode<synchronous>, transform_indices = @transform_6, window_bounds = array<i64: 64, 16>}, {pipeline_mode = #tpu.pipeline_mode<synchronous>, transform_indices = @transform_7, window_bounds = array<i64: 16, 16>}, {pipeline_mode = #tpu.pipeline_mode<synchronous>, transform_indices = @transform_8, window_bounds = array<i64: 1, 16>}, {pipeline_mode = #tpu.pipeline_mode<synchronous>, transform_indices = @transform_9, window_bounds = array<i64: 64, 256>}, {pipeline_mode = #tpu.pipeline_mode<synchronous>, transform_indices = @transform_10, window_bounds = array<i64: 1, 256>}, {pipeline_mode = #tpu.pipeline_mode<synchronous>, transform_indices = @transform_11, window_bounds = array<i64: 16, 64>}, {pipeline_mode = #tpu.pipeline_mode<synchronous>, transform_indices = @transform_12, window_bounds = array<i64: 1, 64>}, {transform_indices = @transform_13, window_bounds = array<i64: 16, 256>}]} {
    %c0 = arith.constant 0 : index
    %c0_0 = arith.constant 0 : index
    %0 = vector.load %arg1[%c0, %c0_0] : memref<16x512xbf16, #tpu.memory_space<vmem>>, vector<16x512xbf16>
    %c0_1 = arith.constant 0 : index
    %c0_2 = arith.constant 0 : index
    %1 = vector.load %arg2[%c0_1, %c0_2] : memref<512x256xbf16, #tpu.memory_space<vmem>>, vector<512x256xbf16>
    %cst = arith.constant dense<0.000000e+00> : vector<16x256xf32>
    %2 = tpu.matmul %0, %1, %cst {dimension_numbers = #tpu.dot_dimension_numbers<[1], [0], [0], [1], [0, 0, 1, 1], [], []>} : vector<16x512xbf16>, vector<512x256xbf16>, vector<16x256xf32> -> vector<16x256xf32>
    %c0_3 = arith.constant 0 : index
    %c0_4 = arith.constant 0 : index
    %3 = vector.load %arg3[%c0_3, %c0_4] : memref<1x256xf32, #tpu.memory_space<vmem>>, vector<1x256xf32>
    %4 = vector.broadcast %3 : vector<1x256xf32> to vector<16x256xf32>
    %5 = arith.addf %2, %4 : vector<16x256xf32>
    %c0_5 = arith.constant 0 : index
    %c0_6 = arith.constant 0 : index
    %6 = vector.load %arg15[%c0_5, %c0_6] : memref<16x256xf32, #tpu.memory_space<vmem>>, vector<16x256xf32>
    tpu.vector_store %arg15[%c0_5, %c0_6], %5 {strides = array<i32>} : memref<16x256xf32, #tpu.memory_space<vmem>>, vector<16x256xf32>,
    %7 = arith.truncf %5 : vector<16x256xf32> to vector<16x256xbf16>
    %c0_7 = arith.constant 0 : index
    %c0_8 = arith.constant 0 : index
    %8 = vector.load %arg4[%c0_7, %c0_8] : memref<256x64xbf16, #tpu.memory_space<vmem>>, vector<256x64xbf16>
    %cst_9 = arith.constant dense<0.000000e+00> : vector<16x64xf32>
    %9 = tpu.matmul %7, %8, %cst_9 {dimension_numbers = #tpu.dot_dimension_numbers<[1], [0], [0], [1], [0, 0, 1, 1], [], []>} : vector<16x256xbf16>, vector<256x64xbf16>, vector<16x64xf32> -> vector<16x64xf32>
    %cst_10 = arith.constant 0.000000e+00 : f32
    %10 = vector.broadcast %cst_10 : f32 to vector<16x64xf32>
    %11 = arith.maximumf %9, %10 : vector<16x64xf32>
    %12 = arith.truncf %11 : vector<16x64xf32> to vector<16x64xbf16>
    %c0_11 = arith.constant 0 : index
    %c0_12 = arith.constant 0 : index
    %13 = vector.load %arg5[%c0_11, %c0_12] : memref<64x64xbf16, #tpu.memory_space<vmem>>, vector<64x64xbf16>
    %cst_13 = arith.constant dense<0.000000e+00> : vector<16x64xf32>
    %14 = tpu.matmul %12, %13, %cst_13 {dimension_numbers = #tpu.dot_dimension_numbers<[1], [0], [0], [1], [0, 0, 1, 1], [], []>} : vector<16x64xbf16>, vector<64x64xbf16>, vector<16x64xf32> -> vector<16x64xf32>
    %c0_14 = arith.constant 0 : index
    %c0_15 = arith.constant 0 : index
    %15 = vector.load %arg6[%c0_14, %c0_15] : memref<1x64xf32, #tpu.memory_space<vmem>>, vector<1x64xf32>
    %16 = vector.broadcast %15 : vector<1x64xf32> to vector<16x64xf32>
    %17 = arith.addf %14, %16 : vector<16x64xf32>
    %c0_16 = arith.constant 0 : index
    %c0_17 = arith.constant 0 : index
    %18 = vector.load %arg16[%c0_16, %c0_17] : memref<16x64xf32, #tpu.memory_space<vmem>>, vector<16x64xf32>
    tpu.vector_store %arg16[%c0_16, %c0_17], %17 {strides = array<i32>} : memref<16x64xf32, #tpu.memory_space<vmem>>, vector<16x64xf32>,
    %19 = arith.truncf %17 : vector<16x64xf32> to vector<16x64xbf16>
    %c0_18 = arith.constant 0 : index
    %c0_19 = arith.constant 0 : index
    %20 = vector.load %arg7[%c0_18, %c0_19] : memref<64x16xbf16, #tpu.memory_space<vmem>>, vector<64x16xbf16>
    %cst_20 = arith.constant dense<0.000000e+00> : vector<16x16xf32>
    %21 = tpu.matmul %19, %20, %cst_20 {dimension_numbers = #tpu.dot_dimension_numbers<[1], [0], [0], [1], [0, 0, 1, 1], [], []>} : vector<16x64xbf16>, vector<64x16xbf16>, vector<16x16xf32> -> vector<16x16xf32>
    %cst_21 = arith.constant 0.000000e+00 : f32
    %22 = vector.broadcast %cst_21 : f32 to vector<16x16xf32>
    %23 = arith.maximumf %21, %22 : vector<16x16xf32>
    %24 = arith.truncf %23 : vector<16x16xf32> to vector<16x16xbf16>
    %c0_22 = arith.constant 0 : index
    %c0_23 = arith.constant 0 : index
    %25 = vector.load %arg8[%c0_22, %c0_23] : memref<16x16xbf16, #tpu.memory_space<vmem>>, vector<16x16xbf16>
    %cst_24 = arith.constant dense<0.000000e+00> : vector<16x16xf32>
    %26 = tpu.matmul %24, %25, %cst_24 {dimension_numbers = #tpu.dot_dimension_numbers<[1], [0], [0], [1], [0, 0, 1, 1], [], []>} : vector<16x16xbf16>, vector<16x16xbf16>, vector<16x16xf32> -> vector<16x16xf32>
    %c0_25 = arith.constant 0 : index
    %c0_26 = arith.constant 0 : index
    %27 = vector.load %arg9[%c0_25, %c0_26] : memref<1x16xf32, #tpu.memory_space<vmem>>, vector<1x16xf32>
    %28 = vector.broadcast %27 : vector<1x16xf32> to vector<16x16xf32>
    %29 = arith.addf %26, %28 : vector<16x16xf32>
    %cst_27 = arith.constant 0.000000e+00 : f32
    %30 = vector.broadcast %cst_27 : f32 to vector<16x16xf32>
    %31 = arith.maximumf %29, %30 : vector<16x16xf32>
    %32 = arith.truncf %31 : vector<16x16xf32> to vector<16x16xbf16>
    %c0_28 = arith.constant 0 : index
    %c0_29 = arith.constant 0 : index
    %33 = vector.load %arg12[%c0_28, %c0_29] : memref<16x64xbf16, #tpu.memory_space<vmem>>, vector<16x64xbf16>
    %cst_30 = arith.constant dense<0.000000e+00> : vector<16x64xf32>
    %34 = tpu.matmul %32, %33, %cst_30 {dimension_numbers = #tpu.dot_dimension_numbers<[1], [0], [0], [1], [0, 0, 1, 1], [], []>} : vector<16x16xbf16>, vector<16x64xbf16>, vector<16x64xf32> -> vector<16x64xf32>
    %c0_31 = arith.constant 0 : index
    %c0_32 = arith.constant 0 : index
    %35 = vector.load %arg13[%c0_31, %c0_32] : memref<1x64xf32, #tpu.memory_space<vmem>>, vector<1x64xf32>
    %36 = vector.broadcast %35 : vector<1x64xf32> to vector<16x64xf32>
    %37 = arith.addf %34, %36 : vector<16x64xf32>
    %c0_33 = arith.constant 0 : index
    %c0_34 = arith.constant 0 : index
    %38 = vector.load %arg16[%c0_33, %c0_34] : memref<16x64xf32, #tpu.memory_space<vmem>>, vector<16x64xf32>
    %39 = arith.addf %37, %38 : vector<16x64xf32>
    %cst_35 = arith.constant 0.000000e+00 : f32
    %40 = vector.broadcast %cst_35 : f32 to vector<16x64xf32>
    %41 = arith.maximumf %39, %40 : vector<16x64xf32>
    %42 = arith.truncf %41 : vector<16x64xf32> to vector<16x64xbf16>
    %c0_36 = arith.constant 0 : index
    %c0_37 = arith.constant 0 : index
    %43 = vector.load %arg10[%c0_36, %c0_37] : memref<64x256xbf16, #tpu.memory_space<vmem>>, vector<64x256xbf16>
    %cst_38 = arith.constant dense<0.000000e+00> : vector<16x256xf32>
    %44 = tpu.matmul %42, %43, %cst_38 {dimension_numbers = #tpu.dot_dimension_numbers<[1], [0], [0], [1], [0, 0, 1, 1], [], []>} : vector<16x64xbf16>, vector<64x256xbf16>, vector<16x256xf32> -> vector<16x256xf32>
    %c0_39 = arith.constant 0 : index
    %c0_40 = arith.constant 0 : index
    %45 = vector.load %arg11[%c0_39, %c0_40] : memref<1x256xf32, #tpu.memory_space<vmem>>, vector<1x256xf32>
    %46 = vector.broadcast %45 : vector<1x256xf32> to vector<16x256xf32>
    %47 = arith.addf %44, %46 : vector<16x256xf32>
    %c0_41 = arith.constant 0 : index
    %c0_42 = arith.constant 0 : index
    %48 = vector.load %arg15[%c0_41, %c0_42] : memref<16x256xf32, #tpu.memory_space<vmem>>, vector<16x256xf32>
    %49 = arith.addf %47, %48 : vector<16x256xf32>
    %cst_43 = arith.constant 0.000000e+00 : f32
    %50 = vector.broadcast %cst_43 : f32 to vector<16x256xf32>
    %51 = arith.maximumf %49, %50 : vector<16x256xf32>
    %cst_44 = arith.constant 0.000000e+00 : f32
    %52 = vector.broadcast %cst_44 : f32 to vector<16x256xf32>
    %53 = arith.subf %52, %51 : vector<16x256xf32>
    %54 = math.exp %53 : vector<16x256xf32>
    %cst_45 = arith.constant 1.000000e+00 : f32
    %55 = vector.broadcast %cst_45 : f32 to vector<16x256xf32>
    %56 = arith.addf %55, %54 : vector<16x256xf32>
    %57 = tpu.reciprocal %56 {approx = true} : vector<16x256xf32> -> vector<16x256xf32>
    %c0_46 = arith.constant 0 : index
    %c0_47 = arith.constant 0 : index
    %58 = vector.load %arg14[%c0_46, %c0_47] : memref<16x256xf32, #tpu.memory_space<vmem>>, vector<16x256xf32>
    tpu.vector_store %arg14[%c0_46, %c0_47], %57 {strides = array<i32>} : memref<16x256xf32, #tpu.memory_space<vmem>>, vector<16x256xf32>,
    return
  }
  func.func @transform_0(%arg0: i32) -> (i32, i32) {
    %c0_i32 = arith.constant 0 : i32
    %c0_i32_0 = arith.constant 0 : i32
    return %arg0, %c0_i32 : i32, i32
  }
  func.func @transform_1(%arg0: i32) -> (i32, i32) {
    %c0_i32 = arith.constant 0 : i32
    %c0_i32_0 = arith.constant 0 : i32
    %c0_i32_1 = arith.constant 0 : i32
    return %c0_i32, %c0_i32_0 : i32, i32
  }
  func.func @transform_2(%arg0: i32) -> (i32, i32) {
    %c0_i32 = arith.constant 0 : i32
    %c0_i32_0 = arith.constant 0 : i32
    %c0_i32_1 = arith.constant 0 : i32
    return %c0_i32, %c0_i32_0 : i32, i32
  }
  func.func @transform_3(%arg0: i32) -> (i32, i32) {
    %c0_i32 = arith.constant 0 : i32
    %c0_i32_0 = arith.constant 0 : i32
    %c0_i32_1 = arith.constant 0 : i32
    return %c0_i32, %c0_i32_0 : i32, i32
  }
  func.func @transform_4(%arg0: i32) -> (i32, i32) {
    %c0_i32 = arith.constant 0 : i32
    %c0_i32_0 = arith.constant 0 : i32
    %c0_i32_1 = arith.constant 0 : i32
    return %c0_i32, %c0_i32_0 : i32, i32
  }
  func.func @transform_5(%arg0: i32) -> (i32, i32) {
    %c0_i32 = arith.constant 0 : i32
    %c0_i32_0 = arith.constant 0 : i32
    %c0_i32_1 = arith.constant 0 : i32
    return %c0_i32, %c0_i32_0 : i32, i32
  }
  func.func @transform_6(%arg0: i32) -> (i32, i32) {
    %c0_i32 = arith.constant 0 : i32
    %c0_i32_0 = arith.constant 0 : i32
    %c0_i32_1 = arith.constant 0 : i32
    return %c0_i32, %c0_i32_0 : i32, i32
  }
  func.func @transform_7(%arg0: i32) -> (i32, i32) {
    %c0_i32 = arith.constant 0 : i32
    %c0_i32_0 = arith.constant 0 : i32
    %c0_i32_1 = arith.constant 0 : i32
    return %c0_i32, %c0_i32_0 : i32, i32
  }
  func.func @transform_8(%arg0: i32) -> (i32, i32) {
    %c0_i32 = arith.constant 0 : i32
    %c0_i32_0 = arith.constant 0 : i32
    %c0_i32_1 = arith.constant 0 : i32
    return %c0_i32, %c0_i32_0 : i32, i32
  }
  func.func @transform_9(%arg0: i32) -> (i32, i32) {
    %c0_i32 = arith.constant 0 : i32
    %c0_i32_0 = arith.constant 0 : i32
    %c0_i32_1 = arith.constant 0 : i32
    return %c0_i32, %c0_i32_0 : i32, i32
  }
  func.func @transform_10(%arg0: i32) -> (i32, i32) {
    %c0_i32 = arith.constant 0 : i32
    %c0_i32_0 = arith.constant 0 : i32
    %c0_i32_1 = arith.constant 0 : i32
    return %c0_i32, %c0_i32_0 : i32, i32
  }
  func.func @transform_11(%arg0: i32) -> (i32, i32) {
    %c0_i32 = arith.constant 0 : i32
    %c0_i32_0 = arith.constant 0 : i32
    %c0_i32_1 = arith.constant 0 : i32
    return %c0_i32, %c0_i32_0 : i32, i32
  }
  func.func @transform_12(%arg0: i32) -> (i32, i32) {
    %c0_i32 = arith.constant 0 : i32
    %c0_i32_0 = arith.constant 0 : i32
    %c0_i32_1 = arith.constant 0 : i32
    return %c0_i32, %c0_i32_0 : i32, i32
  }
  func.func @transform_13(%arg0: i32) -> (i32, i32) {
    %c0_i32 = arith.constant 0 : i32
    %c0_i32_0 = arith.constant 0 : i32
    return %arg0, %c0_i32 : i32, i32
  }
}

</mosaic_0001>

<llo_original>
// kernel: tpu_custom_call.1
$region0: #{tpu_custom_call.1}
  #allocation0 [shape = 'u32[]', space=smem, size = 0x4, offset = 0x4, fixed_abs, tag = 'smem constant byte address 0x4 - core index']
  #allocation1 [shape = 'u32[72,128]{1,0:T(1,128)}', space=vmem, size = 0x9000, scoped, tag = 'internal scratch']
  #allocation2 [shape = 'f32[16,256]{1,0:T(8,128)}', space=vmem, size = 0x4000, scoped, tag = 'scratch operand']
  #allocation3 [shape = 'f32[16,64]{1,0:T(8,128)}', space=vmem, size = 0x2000, scoped, tag = 'scratch operand']
  %s0 = inlined_call_operand.vmem [shape: bf16[16,512], index: 0, kind: input, shape index: {}]
  %s1 = inlined_call_operand.hbm [shape: bf16[512,256], index: 1, kind: input, shape index: {}]
  %s2 = inlined_call_operand.vmem [shape: f32[1,256], index: 2, kind: input, shape index: {}]
  %s3 = inlined_call_operand.vmem [shape: bf16[256,64], index: 3, kind: input, shape index: {}]
  %s4 = inlined_call_operand.vmem [shape: bf16[64,64], index: 4, kind: input, shape index: {}]
  %s5 = inlined_call_operand.vmem [shape: f32[1,64], index: 5, kind: input, shape index: {}]
  %s6 = inlined_call_operand.vmem [shape: bf16[64,16], index: 6, kind: input, shape index: {}]
  %s7 = inlined_call_operand.vmem [shape: bf16[16,16], index: 7, kind: input, shape index: {}]
  %s8 = inlined_call_operand.vmem [shape: f32[1,16], index: 8, kind: input, shape index: {}]
  %s9 = inlined_call_operand.vmem [shape: bf16[64,256], index: 9, kind: input, shape index: {}]
  %s10 = inlined_call_operand.vmem [shape: f32[1,256], index: 10, kind: input, shape index: {}]
  %s11 = inlined_call_operand.vmem [shape: bf16[16,64], index: 11, kind: input, shape index: {}]
  %s12 = inlined_call_operand.vmem [shape: f32[1,64], index: 12, kind: input, shape index: {}]
  %s13 = inlined_call_operand.hbm [shape: f32[16,256], index: 13, kind: output, shape index: {}]
  %s14 = sld [smem:[#allocation0]]
  $region66: #{tpu_custom_call.1} parent=0
    _
  %s16 = ssub.s32 1, %s14
  %s17 = scalar_select 0, %s16, %s14
  $region1: #{tpu_custom_call.1} parent=0
    #allocation4 [shape = 'u8[262144]{0}', space=vmem, size = 0x40000, scoped, tag = 'input window, operand 1, single buffered']
    #allocation5 [shape = 's32[1]{0}', space=sflag, size = 0x4, scoped, tag = 'scoped memory for tpu_custom_call.1']
    #allocation6 [shape = 's32[1]{0}', space=sflag, size = 0x4, scoped, tag = 'scoped memory for tpu_custom_call.1']
    #allocation7 [shape = 'u8[16384]{0}', space=vmem, size = 0x4000, scoped, tag = 'output window, operand 0, single buffered']
    %18 = vsyncpa [#allocation5], 0
    %19 = vsyncpa [#allocation6], 0
    // Predicated region
    $region2: #{tpu_custom_call.1} parent=1 // pred_check
      _
    $region3: #{tpu_custom_call.1} parent=1 // pred_check_branch
      %21 = sbr.rel (0) target = $region5
    $region4: #{tpu_custom_call.1} parent=1 // pred_region
      _
    $region5: #{tpu_custom_call.1} parent=1 // pred_fallthru
      _
    // Predicated region
    $region6: #{tpu_custom_call.1} parent=1 // pred_check
      _
    $region7: #{tpu_custom_call.1} parent=1 // pred_check_branch
      %23 = sbr.rel (0) target = $region9
    $region8: #{tpu_custom_call.1} parent=1 // pred_region
      %25 = vsyncadd [#allocation5], 0
      %s26 = sshll.u32 %s1, 4
      %s27 = int_to_ptr.hbm [resolvable:$true] %s26
      %s28 = sshll.u32 [#allocation4], 4
      %s29 = int_to_ptr.vmem [resolvable:$true] %s28
      %34 = dma.hbm_to_vmem [thread:$0]  %s27, 8192, %s29, [#allocation5], 128, 128, 8
    $region9: #{tpu_custom_call.1} parent=1 // pred_fallthru
      _
    // Predicated region
    $region10: #{tpu_custom_call.1} parent=1 // pred_check
      _
    $region11: #{tpu_custom_call.1} parent=1 // pred_check_branch
      %36 = sbr.rel (0) target = $region13
    $region12: #{tpu_custom_call.1} parent=1 // pred_region
      _
    $region13: #{tpu_custom_call.1} parent=1 // pred_fallthru
      _
    // Predicated region
    $region14: #{tpu_custom_call.1} parent=1 // pred_check
      _
    $region15: #{tpu_custom_call.1} parent=1 // pred_check_branch
      %38 = sbr.rel (0) target = $region17
    $region16: #{tpu_custom_call.1} parent=1 // pred_region
      _
    $region17: #{tpu_custom_call.1} parent=1 // pred_fallthru
      _
    // Predicated region
    $region18: #{tpu_custom_call.1} parent=1 // pred_check
      _
    $region19: #{tpu_custom_call.1} parent=1 // pred_check_branch
      %40 = sbr.rel (0) target = $region21
    $region20: #{tpu_custom_call.1} parent=1 // pred_region
      _
    $region21: #{tpu_custom_call.1} parent=1 // pred_fallthru
      _
    // Predicated region
    $region22: #{tpu_custom_call.1} parent=1 // pred_check
      _
    $region23: #{tpu_custom_call.1} parent=1 // pred_check_branch
      %42 = sbr.rel (0) target = $region25
    $region24: #{tpu_custom_call.1} parent=1 // pred_region
      _
    $region25: #{tpu_custom_call.1} parent=1 // pred_fallthru
      _
    // Predicated region
    $region26: #{tpu_custom_call.1} parent=1 // pred_check
      _
    $region27: #{tpu_custom_call.1} parent=1 // pred_check_branch
      %44 = sbr.rel (0) target = $region29
    $region28: #{tpu_custom_call.1} parent=1 // pred_region
      _
    $region29: #{tpu_custom_call.1} parent=1 // pred_fallthru
      _
    // Predicated region
    $region30: #{tpu_custom_call.1} parent=1 // pred_check
      _
    $region31: #{tpu_custom_call.1} parent=1 // pred_check_branch
      %46 = sbr.rel (0) target = $region33
    $region32: #{tpu_custom_call.1} parent=1 // pred_region
      _
    $region33: #{tpu_custom_call.1} parent=1 // pred_fallthru
      _
    // Predicated region
    $region34: #{tpu_custom_call.1} parent=1 // pred_check
      _
    $region35: #{tpu_custom_call.1} parent=1 // pred_check_branch
      %48 = sbr.rel (0) target = $region37
    $region36: #{tpu_custom_call.1} parent=1 // pred_region
      _
    $region37: #{tpu_custom_call.1} parent=1 // pred_fallthru
      _
    // Predicated region
    $region38: #{tpu_custom_call.1} parent=1 // pred_check
      _
    $region39: #{tpu_custom_call.1} parent=1 // pred_check_branch
      %50 = sbr.rel (0) target = $region41
    $region40: #{tpu_custom_call.1} parent=1 // pred_region
      _
    $region41: #{tpu_custom_call.1} parent=1 // pred_fallthru
      _
    // Predicated region
    $region42: #{tpu_custom_call.1} parent=1 // pred_check
      _
    $region43: #{tpu_custom_call.1} parent=1 // pred_check_branch
      %52 = sbr.rel (0) target = $region45
    $region44: #{tpu_custom_call.1} parent=1 // pred_region
      _
    $region45: #{tpu_custom_call.1} parent=1 // pred_fallthru
      _
    // Predicated region
    $region46: #{tpu_custom_call.1} parent=1 // pred_check
      _
    $region47: #{tpu_custom_call.1} parent=1 // pred_check_branch
      %54 = sbr.rel (0) target = $region49
    $region48: #{tpu_custom_call.1} parent=1 // pred_region
      _
    $region49: #{tpu_custom_call.1} parent=1 // pred_fallthru
      _
    // Predicated region
    $region50: #{tpu_custom_call.1} parent=1 // pred_check
      _
    $region51: #{tpu_custom_call.1} parent=1 // pred_check_branch
      %56 = sbr.rel (0) target = $region53
    $region52: #{tpu_custom_call.1} parent=1 // pred_region
      _
    $region53: #{tpu_custom_call.1} parent=1 // pred_fallthru
      _
    // Predicated region
    $region54: #{tpu_custom_call.1} parent=1 // pred_check
      _
    $region55: #{tpu_custom_call.1} parent=1 // pred_check_branch
      %58 = sbr.rel (0) target = $region57
    $region56: #{tpu_custom_call.1} parent=1 // pred_region
      %60 = dma.done [#allocation5], 8192
    $region57: #{tpu_custom_call.1} parent=1 // pred_fallthru
      _
    %v62 = vld [vmem:[%s0] sm:$0xff]
    %v63 = vld [vmem:[%s0 + $0x8] sm:$0xff]
    %v64 = vld [vmem:[%s0 + $0x10] sm:$0xff]
    %v65 = vld [vmem:[%s0 + $0x18] sm:$0xff]
    %v66 = vld [vmem:[#allocation4] sm:$0xff]
    %v67 = vld [vmem:[#allocation4 + $0x8] sm:$0xff]
    %v68 = vld [vmem:[#allocation4 + $0x10] sm:$0xff]
    %v69 = vld [vmem:[#allocation4 + $0x18] sm:$0xff]
    %v70 = vld [vmem:[#allocation4 + $0x20] sm:$0xff]
    %v71 = vld [vmem:[#allocation4 + $0x28] sm:$0xff]
    %v72 = vld [vmem:[#allocation4 + $0x30] sm:$0xff]
    %v73 = vld [vmem:[#allocation4 + $0x38] sm:$0xff]
    %v74 = vld [vmem:[#allocation4 + $0x40] sm:$0xff]
    %v75 = vld [vmem:[#allocation4 + $0x48] sm:$0xff]
    %v76 = vld [vmem:[#allocation4 + $0x50] sm:$0xff]
    %v77 = vld [vmem:[#allocation4 + $0x58] sm:$0xff]
    %v78 = vld [vmem:[#allocation4 + $0x60] sm:$0xff]
    %v79 = vld [vmem:[#allocation4 + $0x68] sm:$0xff]
    %v80 = vld [vmem:[#allocation4 + $0x70] sm:$0xff]
    %v81 = vld [vmem:[#allocation4 + $0x78] sm:$0xff]
    %v82 = vld [vmem:[#allocation4 + $0x80] sm:$0xff]
    %v83 = vld [vmem:[#allocation4 + $0x88] sm:$0xff]
    %v84 = vld [vmem:[#allocation4 + $0x90] sm:$0xff]
    %v85 = vld [vmem:[#allocation4 + $0x98] sm:$0xff]
    %v86 = vld [vmem:[#allocation4 + $0xa0] sm:$0xff]
    %v87 = vld [vmem:[#allocation4 + $0xa8] sm:$0xff]
    %v88 = vld [vmem:[#allocation4 + $0xb0] sm:$0xff]
    %v89 = vld [vmem:[#allocation4 + $0xb8] sm:$0xff]
    %v90 = vld [vmem:[#allocation4 + $0xc0] sm:$0xff]
    %v91 = vld [vmem:[#allocation4 + $0xc8] sm:$0xff]
    %v92 = vld [vmem:[#allocation4 + $0xd0] sm:$0xff]
    %v93 = vld [vmem:[#allocation4 + $0xd8] sm:$0xff]
    %v94 = vld [vmem:[#allocation4 + $0xe0] sm:$0xff]
    %v95 = vld [vmem:[#allocation4 + $0xe8] sm:$0xff]
    %v96 = vld [vmem:[#allocation4 + $0xf0] sm:$0xff]
    %v97 = vld [vmem:[#allocation4 + $0xf8] sm:$0xff]
    %v98 = vld [vmem:[#allocation4 + $0x100] sm:$0xff]
    %v99 = vld [vmem:[#allocation4 + $0x108] sm:$0xff]
    %v100 = vld [vmem:[#allocation4 + $0x110] sm:$0xff]
    %v101 = vld [vmem:[#allocation4 + $0x118] sm:$0xff]
    %v102 = vld [vmem:[#allocation4 + $0x120] sm:$0xff]
    %v103 = vld [vmem:[#allocation4 + $0x128] sm:$0xff]
    %v104 = vld [vmem:[#allocation4 + $0x130] sm:$0xff]
    %v105 = vld [vmem:[#allocation4 + $0x138] sm:$0xff]
    %v106 = vld [vmem:[#allocation4 + $0x140] sm:$0xff]
    %v107 = vld [vmem:[#allocation4 + $0x148] sm:$0xff]
    %v108 = vld [vmem:[#allocation4 + $0x150] sm:$0xff]
    %v109 = vld [vmem:[#allocation4 + $0x158] sm:$0xff]
    %v110 = vld [vmem:[#allocation4 + $0x160] sm:$0xff]
    %v111 = vld [vmem:[#allocation4 + $0x168] sm:$0xff]
    %v112 = vld [vmem:[#allocation4 + $0x170] sm:$0xff]
    %v113 = vld [vmem:[#allocation4 + $0x178] sm:$0xff]
    %v114 = vld [vmem:[#allocation4 + $0x180] sm:$0xff]
    %v115 = vld [vmem:[#allocation4 + $0x188] sm:$0xff]
    %v116 = vld [vmem:[#allocation4 + $0x190] sm:$0xff]
    %v117 = vld [vmem:[#allocation4 + $0x198] sm:$0xff]
    %v118 = vld [vmem:[#allocation4 + $0x1a0] sm:$0xff]
    %v119 = vld [vmem:[#allocation4 + $0x1a8] sm:$0xff]
    %v120 = vld [vmem:[#allocation4 + $0x1b0] sm:$0xff]
    %v121 = vld [vmem:[#allocation4 + $0x1b8] sm:$0xff]
    %v122 = vld [vmem:[#allocation4 + $0x1c0] sm:$0xff]
    %v123 = vld [vmem:[#allocation4 + $0x1c8] sm:$0xff]
    %v124 = vld [vmem:[#allocation4 + $0x1d0] sm:$0xff]
    %v125 = vld [vmem:[#allocation4 + $0x1d8] sm:$0xff]
    %v126 = vld [vmem:[#allocation4 + $0x1e0] sm:$0xff]
    %v127 = vld [vmem:[#allocation4 + $0x1e8] sm:$0xff]
    %v128 = vld [vmem:[#allocation4 + $0x1f0] sm:$0xff]
    %v129 = vld [vmem:[#allocation4 + $0x1f8] sm:$0xff]
    %v130 = vld [vmem:[%s2] sm:$0x3]
    %v132 = vperm.slane %v130, 0
    %v133 = vperm.slane %v130, 1
    %v140 = vunpack.c.l.b16 %v62
    %v141 = vunpack.c.h.b16 %v62
    %v142 = vunpack.c.l.b16 %v63
    %v143 = vunpack.c.h.b16 %v63
    %v144 = vunpack.c.l.b16 %v64
    %v145 = vunpack.c.h.b16 %v64
    %v146 = vunpack.c.l.b16 %v65
    %v147 = vunpack.c.h.b16 %v65
    %v148 = vpack.c.b16 %v144, %v140
    %v149 = vpack.c.b16 %v145, %v141
    %v150 = vpack.c.b16 %v146, %v142
    %v151 = vpack.c.b16 %v147, %v143
    %v220 = vunpack.c.l.b16 %v66
    %v221 = vunpack.c.h.b16 %v66
    %v222 = vunpack.c.l.b16 %v67
    %v223 = vunpack.c.h.b16 %v67
    %v224 = vunpack.c.l.b16 %v68
    %v225 = vunpack.c.h.b16 %v68
    %v226 = vunpack.c.l.b16 %v69
    %v227 = vunpack.c.h.b16 %v69
    %v228 = vunpack.c.l.b16 %v70
    %v229 = vunpack.c.h.b16 %v70
    %v230 = vunpack.c.l.b16 %v71
    %v231 = vunpack.c.h.b16 %v71
    %v232 = vunpack.c.l.b16 %v72
    %v233 = vunpack.c.h.b16 %v72
    %v234 = vunpack.c.l.b16 %v73
    %v235 = vunpack.c.h.b16 %v73
    %v236 = vunpack.c.l.b16 %v74
    %v237 = vunpack.c.h.b16 %v74
    %v238 = vunpack.c.l.b16 %v75
    %v239 = vunpack.c.h.b16 %v75
    %v240 = vunpack.c.l.b16 %v76
    %v241 = vunpack.c.h.b16 %v76
    %v242 = vunpack.c.l.b16 %v77
    %v243 = vunpack.c.h.b16 %v77
    %v244 = vunpack.c.l.b16 %v78
    %v245 = vunpack.c.h.b16 %v78
    %v246 = vunpack.c.l.b16 %v79
    %v247 = vunpack.c.h.b16 %v79
    %v248 = vunpack.c.l.b16 %v80
    %v249 = vunpack.c.h.b16 %v80
    %v250 = vunpack.c.l.b16 %v81
    %v251 = vunpack.c.h.b16 %v81
    %v252 = vunpack.c.l.b16 %v82
    %v253 = vunpack.c.h.b16 %v82
    %v254 = vunpack.c.l.b16 %v83
    %v255 = vunpack.c.h.b16 %v83
    %v256 = vunpack.c.l.b16 %v84
    %v257 = vunpack.c.h.b16 %v84
    %v258 = vunpack.c.l.b16 %v85
    %v259 = vunpack.c.h.b16 %v85
    %v260 = vunpack.c.l.b16 %v86
    %v261 = vunpack.c.h.b16 %v86
    %v262 = vunpack.c.l.b16 %v87
    %v263 = vunpack.c.h.b16 %v87
    %v264 = vunpack.c.l.b16 %v88
    %v265 = vunpack.c.h.b16 %v88
    %v266 = vunpack.c.l.b16 %v89
    %v267 = vunpack.c.h.b16 %v89
    %v268 = vunpack.c.l.b16 %v90
    %v269 = vunpack.c.h.b16 %v90
    %v270 = vunpack.c.l.b16 %v91
    %v271 = vunpack.c.h.b16 %v91
    %v272 = vunpack.c.l.b16 %v92
    %v273 = vunpack.c.h.b16 %v92
    %v274 = vunpack.c.l.b16 %v93
    %v275 = vunpack.c.h.b16 %v93
    %v276 = vunpack.c.l.b16 %v94
    %v277 = vunpack.c.h.b16 %v94
    %v278 = vunpack.c.l.b16 %v95
    %v279 = vunpack.c.h.b16 %v95
    %v280 = vunpack.c.l.b16 %v96
    %v281 = vunpack.c.h.b16 %v96
    %v282 = vunpack.c.l.b16 %v97
    %v283 = vunpack.c.h.b16 %v97
    %v284 = vunpack.c.l.b16 %v98
    %v285 = vunpack.c.h.b16 %v98
    %v286 = vunpack.c.l.b16 %v99
    %v287 = vunpack.c.h.b16 %v99
    %v288 = vunpack.c.l.b16 %v100
    %v289 = vunpack.c.h.b16 %v100
    %v290 = vunpack.c.l.b16 %v101
    %v291 = vunpack.c.h.b16 %v101
    %v292 = vunpack.c.l.b16 %v102
    %v293 = vunpack.c.h.b16 %v102
    %v294 = vunpack.c.l.b16 %v103
    %v295 = vunpack.c.h.b16 %v103
    %v296 = vunpack.c.l.b16 %v104
    %v297 = vunpack.c.h.b16 %v104
    %v298 = vunpack.c.l.b16 %v105
    %v299 = vunpack.c.h.b16 %v105
    %v300 = vunpack.c.l.b16 %v106
    %v301 = vunpack.c.h.b16 %v106
    %v302 = vunpack.c.l.b16 %v107
    %v303 = vunpack.c.h.b16 %v107
    %v304 = vunpack.c.l.b16 %v108
    %v305 = vunpack.c.h.b16 %v108
    %v306 = vunpack.c.l.b16 %v109
    %v307 = vunpack.c.h.b16 %v109
    %v308 = vunpack.c.l.b16 %v110
    %v309 = vunpack.c.h.b16 %v110
    %v310 = vunpack.c.l.b16 %v111
    %v311 = vunpack.c.h.b16 %v111
    %v312 = vunpack.c.l.b16 %v112
    %v313 = vunpack.c.h.b16 %v112
    %v314 = vunpack.c.l.b16 %v113
    %v315 = vunpack.c.h.b16 %v113
    %v316 = vunpack.c.l.b16 %v114
    %v317 = vunpack.c.h.b16 %v114
    %v318 = vunpack.c.l.b16 %v115
    %v319 = vunpack.c.h.b16 %v115
    %v320 = vunpack.c.l.b16 %v116
    %v321 = vunpack.c.h.b16 %v116
    %v322 = vunpack.c.l.b16 %v117
    %v323 = vunpack.c.h.b16 %v117
    %v324 = vunpack.c.l.b16 %v118
    %v325 = vunpack.c.h.b16 %v118
    %v326 = vunpack.c.l.b16 %v119
    %v327 = vunpack.c.h.b16 %v119
    %v328 = vunpack.c.l.b16 %v120
    %v329 = vunpack.c.h.b16 %v120
    %v330 = vunpack.c.l.b16 %v121
    %v331 = vunpack.c.h.b16 %v121
    %v332 = vunpack.c.l.b16 %v122
    %v333 = vunpack.c.h.b16 %v122
    %v334 = vunpack.c.l.b16 %v123
    %v335 = vunpack.c.h.b16 %v123
    %v336 = vunpack.c.l.b16 %v124
    %v337 = vunpack.c.h.b16 %v124
    %v338 = vunpack.c.l.b16 %v125
    %v339 = vunpack.c.h.b16 %v125
    %v340 = vunpack.c.l.b16 %v126
    %v341 = vunpack.c.h.b16 %v126
    %v342 = vunpack.c.l.b16 %v127
    %v343 = vunpack.c.h.b16 %v127
    %v344 = vunpack.c.l.b16 %v128
    %v345 = vunpack.c.h.b16 %v128
    %v346 = vunpack.c.l.b16 %v129
    %v347 = vunpack.c.h.b16 %v129
    %v348 = vpack.c.b16 %v222, %v220
    %v349 = vpack.c.b16 %v223, %v221
    %v350 = vpack.c.b16 %v226, %v224
    %v351 = vpack.c.b16 %v227, %v225
    %v352 = vpack.c.b16 %v230, %v228
    %v353 = vpack.c.b16 %v231, %v229
    %v354 = vpack.c.b16 %v234, %v232
    %v355 = vpack.c.b16 %v235, %v233
    %v356 = vpack.c.b16 %v238, %v236
    %v357 = vpack.c.b16 %v239, %v237
    %v358 = vpack.c.b16 %v242, %v240
    %v359 = vpack.c.b16 %v243, %v241
    %v360 = vpack.c.b16 %v246, %v244
    %v361 = vpack.c.b16 %v247, %v245
    %v362 = vpack.c.b16 %v250, %v248
    %v363 = vpack.c.b16 %v251, %v249
    %v364 = vpack.c.b16 %v254, %v252
    %v365 = vpack.c.b16 %v255, %v253
    %v366 = vpack.c.b16 %v258, %v256
    %v367 = vpack.c.b16 %v259, %v257
    %v368 = vpack.c.b16 %v262, %v260
    %v369 = vpack.c.b16 %v263, %v261
    %v370 = vpack.c.b16 %v266, %v264
    %v371 = vpack.c.b16 %v267, %v265
    %v372 = vpack.c.b16 %v270, %v268
    %v373 = vpack.c.b16 %v271, %v269
    %v374 = vpack.c.b16 %v274, %v272
    %v375 = vpack.c.b16 %v275, %v273
    %v376 = vpack.c.b16 %v278, %v276
    %v377 = vpack.c.b16 %v279, %v277
    %v378 = vpack.c.b16 %v282, %v280
    %v379 = vpack.c.b16 %v283, %v281
    %v380 = vpack.c.b16 %v286, %v284
    %v381 = vpack.c.b16 %v287, %v285
    %v382 = vpack.c.b16 %v290, %v288
    %v383 = vpack.c.b16 %v291, %v289
    %v384 = vpack.c.b16 %v294, %v292
    %v385 = vpack.c.b16 %v295, %v293
    %v386 = vpack.c.b16 %v298, %v296
    %v387 = vpack.c.b16 %v299, %v297
    %v388 = vpack.c.b16 %v302, %v300
    %v389 = vpack.c.b16 %v303, %v301
    %v390 = vpack.c.b16 %v306, %v304
    %v391 = vpack.c.b16 %v307, %v305
    %v392 = vpack.c.b16 %v310, %v308
    %v393 = vpack.c.b16 %v311, %v309
    %v394 = vpack.c.b16 %v314, %v312
    %v395 = vpack.c.b16 %v315, %v313
    %v396 = vpack.c.b16 %v318, %v316
    %v397 = vpack.c.b16 %v319, %v317
    %v398 = vpack.c.b16 %v322, %v320
    %v399 = vpack.c.b16 %v323, %v321
    %v400 = vpack.c.b16 %v326, %v324
    %v401 = vpack.c.b16 %v327, %v325
    %v402 = vpack.c.b16 %v330, %v328
    %v403 = vpack.c.b16 %v331, %v329
    %v404 = vpack.c.b16 %v334, %v332
    %v405 = vpack.c.b16 %v335, %v333
    %v406 = vpack.c.b16 %v338, %v336
    %v407 = vpack.c.b16 %v339, %v337
    %v408 = vpack.c.b16 %v342, %v340
    %v409 = vpack.c.b16 %v343, %v341
    %v410 = vpack.c.b16 %v346, %v344
    %v411 = vpack.c.b16 %v347, %v345
    %476 = vmatpush.bf16.msra.mxu0 %v362
    %477 = vmatpush.bf16.msra.mxu0 %v360
    %478 = vmatpush.bf16.msra.mxu0 %v358
    %479 = vmatpush.bf16.msra.mxu0 %v356
    %480 = vmatpush.bf16.msra.mxu0 %v354
    %481 = vmatpush.bf16.msra.mxu0 %v352
    %482 = vmatpush.bf16.msra.mxu0 %v350
    %483 = vmatpush.bf16.msra.mxu0 %v348
    %484 = vmatmul.bf16.gmra.mxu0 %v148
    %v485 = vpop.f32.mrf.mxu0
    %v486 = vadd.f32 %v132, %v485
    %v487 = vpop.f32.mrf.mxu0
    %v488 = vadd.f32 %v132, %v487
    %489 = vdwg.mxu0
    %490 = vmatpush.bf16.msra.mxu0 %v378
    %491 = vmatpush.bf16.msra.mxu0 %v376
    %492 = vmatpush.bf16.msra.mxu0 %v374
    %493 = vmatpush.bf16.msra.mxu0 %v372
    %494 = vmatpush.bf16.msra.mxu0 %v370
    %495 = vmatpush.bf16.msra.mxu0 %v368
    %496 = vmatpush.bf16.msra.mxu0 %v366
    %497 = vmatpush.bf16.msra.mxu0 %v364
    %498 = vmatmul.bf16.gmra.mxu0 %v149
    %v499 = vpop.f32.mrf.mxu0
    %v500 = vadd.f32 %v486, %v499
    %v501 = vpop.f32.mrf.mxu0
    %v502 = vadd.f32 %v488, %v501
    %503 = vdwg.mxu0
    %504 = vmatpush.bf16.msra.mxu0 %v394
    %505 = vmatpush.bf16.msra.mxu0 %v392
    %506 = vmatpush.bf16.msra.mxu0 %v390
    %507 = vmatpush.bf16.msra.mxu0 %v388
    %508 = vmatpush.bf16.msra.mxu0 %v386
    %509 = vmatpush.bf16.msra.mxu0 %v384
    %510 = vmatpush.bf16.msra.mxu0 %v382
    %511 = vmatpush.bf16.msra.mxu0 %v380
    %512 = vmatmul.bf16.gmra.mxu0 %v150
    %v513 = vpop.f32.mrf.mxu0
    %v514 = vadd.f32 %v500, %v513
    %v515 = vpop.f32.mrf.mxu0
    %v516 = vadd.f32 %v502, %v515
    %517 = vdwg.mxu0
    %518 = vmatpush.bf16.msra.mxu0 %v410
    %519 = vmatpush.bf16.msra.mxu0 %v408
    %520 = vmatpush.bf16.msra.mxu0 %v406
    %521 = vmatpush.bf16.msra.mxu0 %v404
    %522 = vmatpush.bf16.msra.mxu0 %v402
    %523 = vmatpush.bf16.msra.mxu0 %v400
    %524 = vmatpush.bf16.msra.mxu0 %v398
    %525 = vmatpush.bf16.msra.mxu0 %v396
    %526 = vmatmul.bf16.gmra.mxu0 %v151
    %v527 = vpop.f32.mrf.mxu0
    %v528 = vadd.f32 %v514, %v527
    %v529 = vpop.f32.mrf.mxu0
    %v530 = vadd.f32 %v516, %v529
    %531 = vdwg.mxu0
    %532 = vmatpush.bf16.msra.mxu0 %v363
    %533 = vmatpush.bf16.msra.mxu0 %v361
    %534 = vmatpush.bf16.msra.mxu0 %v359
    %535 = vmatpush.bf16.msra.mxu0 %v357
    %536 = vmatpush.bf16.msra.mxu0 %v355
    %537 = vmatpush.bf16.msra.mxu0 %v353
    %538 = vmatpush.bf16.msra.mxu0 %v351
    %539 = vmatpush.bf16.msra.mxu0 %v349
    %540 = vmatmul.bf16.gmra.mxu0 %v148
    %v541 = vpop.f32.mrf.mxu0
    %v542 = vadd.f32 %v133, %v541
    %v543 = vpop.f32.mrf.mxu0
    %v544 = vadd.f32 %v133, %v543
    %545 = vdwg.mxu0
    %546 = vmatpush.bf16.msra.mxu0 %v379
    %547 = vmatpush.bf16.msra.mxu0 %v377
    %548 = vmatpush.bf16.msra.mxu0 %v375
    %549 = vmatpush.bf16.msra.mxu0 %v373
    %550 = vmatpush.bf16.msra.mxu0 %v371
    %551 = vmatpush.bf16.msra.mxu0 %v369
    %552 = vmatpush.bf16.msra.mxu0 %v367
    %553 = vmatpush.bf16.msra.mxu0 %v365
    %554 = vmatmul.bf16.gmra.mxu0 %v149
    %v555 = vpop.f32.mrf.mxu0
    %v556 = vadd.f32 %v542, %v555
    %v557 = vpop.f32.mrf.mxu0
    %v558 = vadd.f32 %v544, %v557
    %559 = vdwg.mxu0
    %560 = vmatpush.bf16.msra.mxu0 %v395
    %561 = vmatpush.bf16.msra.mxu0 %v393
    %562 = vmatpush.bf16.msra.mxu0 %v391
    %563 = vmatpush.bf16.msra.mxu0 %v389
    %564 = vmatpush.bf16.msra.mxu0 %v387
    %565 = vmatpush.bf16.msra.mxu0 %v385
    %566 = vmatpush.bf16.msra.mxu0 %v383
    %567 = vmatpush.bf16.msra.mxu0 %v381
    %568 = vmatmul.bf16.gmra.mxu0 %v150
    %v569 = vpop.f32.mrf.mxu0
    %v570 = vadd.f32 %v556, %v569
    %v571 = vpop.f32.mrf.mxu0
    %v572 = vadd.f32 %v558, %v571
    %573 = vdwg.mxu0
    %574 = vmatpush.bf16.msra.mxu0 %v411
    %575 = vmatpush.bf16.msra.mxu0 %v409
    %576 = vmatpush.bf16.msra.mxu0 %v407
    %577 = vmatpush.bf16.msra.mxu0 %v405
    %578 = vmatpush.bf16.msra.mxu0 %v403
    %579 = vmatpush.bf16.msra.mxu0 %v401
    %580 = vmatpush.bf16.msra.mxu0 %v399
    %581 = vmatpush.bf16.msra.mxu0 %v397
    %582 = vmatmul.bf16.gmra.mxu0 %v151
    %v583 = vpop.f32.mrf.mxu0
    %v584 = vadd.f32 %v570, %v583
    %v585 = vpop.f32.mrf.mxu0
    %v586 = vadd.f32 %v572, %v585
    %587 = vdwg.mxu0
    %588 = vst [vmem:[#allocation2] sm:$0xff] %v528
    %589 = vst [vmem:[#allocation2 + $0x8] sm:$0xff] %v584
    %590 = vst [vmem:[#allocation2 + $0x10] sm:$0xff] %v530
    %591 = vst [vmem:[#allocation2 + $0x18] sm:$0xff] %v586
    %v592 = vpack.c.bf16 %v530, %v528
    %v593 = vpack.c.bf16 %v586, %v584
    %v594 = vld [vmem:[%s3] sm:$0xf]
    %v595 = vld [vmem:[%s3 + $0x4] sm:$0xf]
    %v596 = vld [vmem:[%s3 + $0x8] sm:$0xf]
    %v597 = vld [vmem:[%s3 + $0xc] sm:$0xf]
    %v598 = vld [vmem:[%s3 + $0x10] sm:$0xf]
    %v599 = vld [vmem:[%s3 + $0x14] sm:$0xf]
    %v600 = vld [vmem:[%s3 + $0x18] sm:$0xf]
    %v601 = vld [vmem:[%s3 + $0x1c] sm:$0xf]
    %v602 = vld [vmem:[%s3 + $0x20] sm:$0xf]
    %v603 = vld [vmem:[%s3 + $0x24] sm:$0xf]
    %v604 = vld [vmem:[%s3 + $0x28] sm:$0xf]
    %v605 = vld [vmem:[%s3 + $0x2c] sm:$0xf]
    %v606 = vld [vmem:[%s3 + $0x30] sm:$0xf]
    %v607 = vld [vmem:[%s3 + $0x34] sm:$0xf]
    %v608 = vld [vmem:[%s3 + $0x38] sm:$0xf]
    %v609 = vld [vmem:[%s3 + $0x3c] sm:$0xf]
    %v610 = vld [vmem:[%s3 + $0x40] sm:$0xf]
    %v611 = vld [vmem:[%s3 + $0x44] sm:$0xf]
    %v612 = vld [vmem:[%s3 + $0x48] sm:$0xf]
    %v613 = vld [vmem:[%s3 + $0x4c] sm:$0xf]
    %v614 = vld [vmem:[%s3 + $0x50] sm:$0xf]
    %v615 = vld [vmem:[%s3 + $0x54] sm:$0xf]
    %v616 = vld [vmem:[%s3 + $0x58] sm:$0xf]
    %v617 = vld [vmem:[%s3 + $0x5c] sm:$0xf]
    %v618 = vld [vmem:[%s3 + $0x60] sm:$0xf]
    %v619 = vld [vmem:[%s3 + $0x64] sm:$0xf]
    %v620 = vld [vmem:[%s3 + $0x68] sm:$0xf]
    %v621 = vld [vmem:[%s3 + $0x6c] sm:$0xf]
    %v622 = vld [vmem:[%s3 + $0x70] sm:$0xf]
    %v623 = vld [vmem:[%s3 + $0x74] sm:$0xf]
    %v624 = vld [vmem:[%s3 + $0x78] sm:$0xf]
    %v625 = vld [vmem:[%s3 + $0x7c] sm:$0xf]
    %v658 = vunpack.c.l.b16 %v594
    %v659 = vunpack.c.l.b16 %v595
    %v660 = vunpack.c.l.b16 %v596
    %v661 = vunpack.c.l.b16 %v597
    %v662 = vunpack.c.l.b16 %v598
    %v663 = vunpack.c.l.b16 %v599
    %v664 = vunpack.c.l.b16 %v600
    %v665 = vunpack.c.l.b16 %v601
    %v666 = vunpack.c.l.b16 %v602
    %v667 = vunpack.c.l.b16 %v603
    %v668 = vunpack.c.l.b16 %v604
    %v669 = vunpack.c.l.b16 %v605
    %v670 = vunpack.c.l.b16 %v606
    %v671 = vunpack.c.l.b16 %v607
    %v672 = vunpack.c.l.b16 %v608
    %v673 = vunpack.c.l.b16 %v609
    %v674 = vunpack.c.l.b16 %v610
    %v675 = vunpack.c.l.b16 %v611
    %v676 = vunpack.c.l.b16 %v612
    %v677 = vunpack.c.l.b16 %v613
    %v678 = vunpack.c.l.b16 %v614
    %v679 = vunpack.c.l.b16 %v615
    %v680 = vunpack.c.l.b16 %v616
    %v681 = vunpack.c.l.b16 %v617
    %v682 = vunpack.c.l.b16 %v618
    %v683 = vunpack.c.l.b16 %v619
    %v684 = vunpack.c.l.b16 %v620
    %v685 = vunpack.c.l.b16 %v621
    %v686 = vunpack.c.l.b16 %v622
    %v687 = vunpack.c.l.b16 %v623
    %v688 = vunpack.c.l.b16 %v624
    %v689 = vunpack.c.l.b16 %v625
    %v690 = vpack.c.b16 %v659, %v658
    %v691 = vpack.c.b16 %v661, %v660
    %v692 = vpack.c.b16 %v663, %v662
    %v693 = vpack.c.b16 %v665, %v664
    %v694 = vpack.c.b16 %v667, %v666
    %v695 = vpack.c.b16 %v669, %v668
    %v696 = vpack.c.b16 %v671, %v670
    %v697 = vpack.c.b16 %v673, %v672
    %v698 = vpack.c.b16 %v675, %v674
    %v699 = vpack.c.b16 %v677, %v676
    %v700 = vpack.c.b16 %v679, %v678
    %v701 = vpack.c.b16 %v681, %v680
    %v702 = vpack.c.b16 %v683, %v682
    %v703 = vpack.c.b16 %v685, %v684
    %v704 = vpack.c.b16 %v687, %v686
    %v705 = vpack.c.b16 %v689, %v688
    %722 = vmatpush.bf16.msra.mxu0 %v697
    %723 = vmatpush.bf16.msra.mxu0 %v696
    %724 = vmatpush.bf16.msra.mxu0 %v695
    %725 = vmatpush.bf16.msra.mxu0 %v694
    %726 = vmatpush.bf16.msra.mxu0 %v693
    %727 = vmatpush.bf16.msra.mxu0 %v692
    %728 = vmatpush.bf16.msra.mxu0 %v691
    %729 = vmatpush.bf16.msra.mxu0 %v690
    %730 = vmatmul.bf16.gmra.mxu0 %v592
    %v731 = vpop.f32.mrf.mxu0
    %v732 = vadd.f32 0.0, %v731
    %v733 = vpop.f32.mrf.mxu0
    %v734 = vadd.f32 0.0, %v733
    %735 = vdwg.mxu0
    %736 = vmatpush.bf16.msra.mxu0 %v705
    %737 = vmatpush.bf16.msra.mxu0 %v704
    %738 = vmatpush.bf16.msra.mxu0 %v703
    %739 = vmatpush.bf16.msra.mxu0 %v702
    %740 = vmatpush.bf16.msra.mxu0 %v701
    %741 = vmatpush.bf16.msra.mxu0 %v700
    %742 = vmatpush.bf16.msra.mxu0 %v699
    %743 = vmatpush.bf16.msra.mxu0 %v698
    %744 = vmatmul.bf16.gmra.mxu0 %v593
    %v745 = vpop.f32.mrf.mxu0
    %v746 = vadd.f32 %v732, %v745
    %v747 = vpop.f32.mrf.mxu0
    %v748 = vadd.f32 %v734, %v747
    %749 = vdwg.mxu0
    %v750 = vmax.f32 %v746, 0.0
    %v751 = vmax.f32 %v748, 0.0
    %v752 = vpack.c.bf16 %v751, %v750
    %v753 = vld [vmem:[%s4] sm:$0xf]
    %v754 = vld [vmem:[%s4 + $0x4] sm:$0xf]
    %v755 = vld [vmem:[%s4 + $0x8] sm:$0xf]
    %v756 = vld [vmem:[%s4 + $0xc] sm:$0xf]
    %v757 = vld [vmem:[%s4 + $0x10] sm:$0xf]
    %v758 = vld [vmem:[%s4 + $0x14] sm:$0xf]
    %v759 = vld [vmem:[%s4 + $0x18] sm:$0xf]
    %v760 = vld [vmem:[%s4 + $0x1c] sm:$0xf]
    %v761 = vld [vmem:[%s5] sm:$0x1]
    %v763 = vperm.slane %v761, 0
    %v773 = vunpack.c.l.b16 %v753
    %v774 = vunpack.c.l.b16 %v754
    %v775 = vunpack.c.l.b16 %v755
    %v776 = vunpack.c.l.b16 %v756
    %v777 = vunpack.c.l.b16 %v757
    %v778 = vunpack.c.l.b16 %v758
    %v779 = vunpack.c.l.b16 %v759
    %v780 = vunpack.c.l.b16 %v760
    %v781 = vpack.c.b16 %v774, %v773
    %v782 = vpack.c.b16 %v776, %v775
    %v783 = vpack.c.b16 %v778, %v777
    %v784 = vpack.c.b16 %v780, %v779
    %vm789 = vcmask 523264
    %v791 = vsel %vm789, %v752, 0
    %793 = vmatpush.bf16.msra.mxu0 0
    %794 = vmatpush.bf16.msra.mxu0 0
    %795 = vmatpush.bf16.msra.mxu0 0
    %796 = vmatpush.bf16.msra.mxu0 0
    %797 = vmatpush.bf16.msra.mxu0 %v784
    %798 = vmatpush.bf16.msra.mxu0 %v783
    %799 = vmatpush.bf16.msra.mxu0 %v782
    %800 = vmatpush.bf16.msra.mxu0 %v781
    %801 = vmatmul.bf16.gmra.mxu0 %v791
    %v802 = vpop.f32.mrf.mxu0
    %v803 = vadd.f32 %v763, %v802
    %v804 = vpop.f32.mrf.mxu0
    %v805 = vadd.f32 %v763, %v804
    %806 = vdwg.mxu0
    %807 = vst.msk [vmem:[#allocation3] sm:$0xff] %vm789, %v803
    %808 = vst.msk [vmem:[#allocation3 + $0x8] sm:$0xff] %vm789, %v805
    %v809 = vpack.c.bf16 %v805, %v803
    %v810 = vld [vmem:[%s6] sm:$0xf]
    %v811 = vld [vmem:[%s6 + $0x4] sm:$0xf]
    %v812 = vld [vmem:[%s6 + $0x8] sm:$0xf]
    %v813 = vld [vmem:[%s6 + $0xc] sm:$0xf]
    %v814 = vld [vmem:[%s6 + $0x10] sm:$0xf]
    %v815 = vld [vmem:[%s6 + $0x14] sm:$0xf]
    %v816 = vld [vmem:[%s6 + $0x18] sm:$0xf]
    %v817 = vld [vmem:[%s6 + $0x1c] sm:$0xf]
    %v826 = vunpack.c.l.b16 %v810
    %v827 = vunpack.c.l.b16 %v811
    %v828 = vunpack.c.l.b16 %v812
    %v829 = vunpack.c.l.b16 %v813
    %v830 = vunpack.c.l.b16 %v814
    %v831 = vunpack.c.l.b16 %v815
    %v832 = vunpack.c.l.b16 %v816
    %v833 = vunpack.c.l.b16 %v817
    %v834 = vpack.c.b16 %v827, %v826
    %v835 = vpack.c.b16 %v829, %v828
    %v836 = vpack.c.b16 %v831, %v830
    %v837 = vpack.c.b16 %v833, %v832
    %v843 = vsel %vm789, %v809, 0
    %845 = vmatpush.bf16.msra.mxu0 0
    %846 = vmatpush.bf16.msra.mxu0 0
    %847 = vmatpush.bf16.msra.mxu0 0
    %848 = vmatpush.bf16.msra.mxu0 0
    %849 = vmatpush.bf16.msra.mxu0 %v837
    %850 = vmatpush.bf16.msra.mxu0 %v836
    %851 = vmatpush.bf16.msra.mxu0 %v835
    %852 = vmatpush.bf16.msra.mxu0 %v834
    %853 = vmatmul.bf16.gmra.mxu0 %v843
    %v854 = vpop.f32.mrf.mxu0
    %v855 = vadd.f32 0.0, %v854
    %v856 = vpop.f32.mrf.mxu0
    %v857 = vadd.f32 0.0, %v856
    %858 = vdwg.mxu0
    %v859 = vmax.f32 %v855, 0.0
    %v860 = vmax.f32 %v857, 0.0
    %v861 = vpack.c.bf16 %v860, %v859
    %v862 = vld [vmem:[%s7] sm:$0xf]
    %v863 = vld [vmem:[%s7 + $0x4] sm:$0xf]
    %v864 = vld [vmem:[%s8] sm:$0x1]
    %v866 = vperm.slane %v864, 0
    %v870 = vunpack.c.l.b16 %v862
    %v871 = vunpack.c.l.b16 %v863
    %v872 = vpack.c.b16 %v871, %v870
    %vm874 = vcmask 130048
    %v876 = vsel %vm874, %v861, 0
    %878 = vmatpush.bf16.msra.mxu0 0
    %879 = vmatpush.bf16.msra.mxu0 0
    %880 = vmatpush.bf16.msra.mxu0 0
    %881 = vmatpush.bf16.msra.mxu0 0
    %882 = vmatpush.bf16.msra.mxu0 0
    %883 = vmatpush.bf16.msra.mxu0 0
    %884 = vmatpush.bf16.msra.mxu0 0
    %885 = vmatpush.bf16.msra.mxu0 %v872
    %886 = vmatmul.bf16.gmra.mxu0 %v876
    %v887 = vpop.f32.mrf.mxu0
    %v888 = vadd.f32 %v866, %v887
    %v889 = vpop.f32.mrf.mxu0
    %v890 = vadd.f32 %v866, %v889
    %891 = vdwg.mxu0
    %v892 = vmax.f32 %v888, 0.0
    %v893 = vmax.f32 %v890, 0.0
    %v894 = vpack.c.bf16 %v893, %v892
    %v895 = vld [vmem:[%s11] sm:$0xf]
    %v896 = vld [vmem:[%s11 + $0x4] sm:$0xf]
    %v897 = vld [vmem:[%s12] sm:$0x1]
    %v899 = vperm.slane %v897, 0
    %v903 = vunpack.c.l.b16 %v895
    %v904 = vunpack.c.l.b16 %v896
    %v905 = vpack.c.b16 %v904, %v903
    %v908 = vsel %vm874, %v894, 0
    %910 = vmatpush.bf16.msra.mxu0 0
    %911 = vmatpush.bf16.msra.mxu0 0
    %912 = vmatpush.bf16.msra.mxu0 0
    %913 = vmatpush.bf16.msra.mxu0 0
    %914 = vmatpush.bf16.msra.mxu0 0
    %915 = vmatpush.bf16.msra.mxu0 0
    %916 = vmatpush.bf16.msra.mxu0 0
    %917 = vmatpush.bf16.msra.mxu0 %v905
    %918 = vmatmul.bf16.gmra.mxu0 %v908
    %v919 = vpop.f32.mrf.mxu0
    %v920 = vadd.f32 %v899, %v919
    %v921 = vpop.f32.mrf.mxu0
    %v922 = vadd.f32 %v899, %v921
    %923 = vdwg.mxu0
    %v924 = vld [vmem:[#allocation3] sm:$0xff]
    %v925 = vld [vmem:[#allocation3 + $0x8] sm:$0xff]
    %v926 = vadd.f32 %v920, %v924
    %v927 = vadd.f32 %v922, %v925
    %v928 = vmax.f32 %v926, 0.0
    %v929 = vmax.f32 %v927, 0.0
    %v930 = vpack.c.bf16 %v929, %v928
    %v931 = vld [vmem:[%s9] sm:$0xff]
    %v932 = vld [vmem:[%s9 + $0x8] sm:$0xff]
    %v933 = vld [vmem:[%s9 + $0x10] sm:$0xff]
    %v934 = vld [vmem:[%s9 + $0x18] sm:$0xff]
    %v935 = vld [vmem:[%s9 + $0x20] sm:$0xff]
    %v936 = vld [vmem:[%s9 + $0x28] sm:$0xff]
    %v937 = vld [vmem:[%s9 + $0x30] sm:$0xff]
    %v938 = vld [vmem:[%s9 + $0x38] sm:$0xff]
    %v939 = vld [vmem:[%s10] sm:$0x3]
    %v941 = vperm.slane %v939, 0
    %v942 = vperm.slane %v939, 1
    %v953 = vunpack.c.l.b16 %v931
    %v954 = vunpack.c.h.b16 %v931
    %v955 = vunpack.c.l.b16 %v932
    %v956 = vunpack.c.h.b16 %v932
    %v957 = vunpack.c.l.b16 %v933
    %v958 = vunpack.c.h.b16 %v933
    %v959 = vunpack.c.l.b16 %v934
    %v960 = vunpack.c.h.b16 %v934
    %v961 = vunpack.c.l.b16 %v935
    %v962 = vunpack.c.h.b16 %v935
    %v963 = vunpack.c.l.b16 %v936
    %v964 = vunpack.c.h.b16 %v936
    %v965 = vunpack.c.l.b16 %v937
    %v966 = vunpack.c.h.b16 %v937
    %v967 = vunpack.c.l.b16 %v938
    %v968 = vunpack.c.h.b16 %v938
    %v969 = vpack.c.b16 %v955, %v953
    %v970 = vpack.c.b16 %v956, %v954
    %v971 = vpack.c.b16 %v959, %v957
    %v972 = vpack.c.b16 %v960, %v958
    %v973 = vpack.c.b16 %v963, %v961
    %v974 = vpack.c.b16 %v964, %v962
    %v975 = vpack.c.b16 %v967, %v965
    %v976 = vpack.c.b16 %v968, %v966
    %v986 = vsel %vm789, %v930, 0
    %988 = vmatpush.bf16.msra.mxu0 0
    %989 = vmatpush.bf16.msra.mxu0 0
    %990 = vmatpush.bf16.msra.mxu0 0
    %991 = vmatpush.bf16.msra.mxu0 0
    %992 = vmatpush.bf16.msra.mxu0 %v975
    %993 = vmatpush.bf16.msra.mxu0 %v973
    %994 = vmatpush.bf16.msra.mxu0 %v971
    %995 = vmatpush.bf16.msra.mxu0 %v969
    %996 = vmatmul.bf16.gmra.mxu0 %v986
    %v997 = vpop.f32.mrf.mxu0
    %v998 = vadd.f32 %v941, %v997
    %v999 = vpop.f32.mrf.mxu0
    %v1000 = vadd.f32 %v941, %v999
    %1001 = vdwg.mxu0
    %1002 = vmatpush.bf16.msra.mxu0 0
    %1003 = vmatpush.bf16.msra.mxu0 0
    %1004 = vmatpush.bf16.msra.mxu0 0
    %1005 = vmatpush.bf16.msra.mxu0 0
    %1006 = vmatpush.bf16.msra.mxu0 %v976
    %1007 = vmatpush.bf16.msra.mxu0 %v974
    %1008 = vmatpush.bf16.msra.mxu0 %v972
    %1009 = vmatpush.bf16.msra.mxu0 %v970
    %1010 = vmatmul.bf16.gmra.mxu0 %v986
    %v1011 = vpop.f32.mrf.mxu0
    %v1012 = vadd.f32 %v942, %v1011
    %v1013 = vpop.f32.mrf.mxu0
    %v1014 = vadd.f32 %v942, %v1013
    %1015 = vdwg.mxu0
    %v1016 = vld [vmem:[#allocation2] sm:$0xff]
    %v1017 = vld [vmem:[#allocation2 + $0x8] sm:$0xff]
    %v1018 = vld [vmem:[#allocation2 + $0x10] sm:$0xff]
    %v1019 = vld [vmem:[#allocation2 + $0x18] sm:$0xff]
    %v1020 = vadd.f32 %v998, %v1016
    %v1021 = vadd.f32 %v1012, %v1017
    %v1022 = vadd.f32 %v1000, %v1018
    %v1023 = vadd.f32 %v1014, %v1019
    %v1024 = vmax.f32 %v1020, 0.0
    %v1025 = vmax.f32 %v1021, 0.0
    %v1026 = vmax.f32 %v1022, 0.0
    %v1027 = vmax.f32 %v1023, 0.0
    %v1028 = vsub.f32 0.0, %v1024
    %v1029 = vsub.f32 0.0, %v1025
    %v1030 = vsub.f32 0.0, %v1026
    %v1031 = vsub.f32 0.0, %v1027
    %v1032 = vmul.f32 %v1028, 1.442695
    %v1033 = vpow.pop %v1032
    %v1034 = vmul.f32 %v1029, 1.442695
    %v1035 = vpow.pop %v1034
    %v1036 = vmul.f32 %v1030, 1.442695
    %v1037 = vpow.pop %v1036
    %v1038 = vmul.f32 %v1031, 1.442695
    %v1039 = vpow.pop %v1038
    %v1040 = vadd.f32 %v1033, 1.0
    %v1041 = vadd.f32 %v1035, 1.0
    %v1042 = vadd.f32 %v1037, 1.0
    %v1043 = vadd.f32 %v1039, 1.0
    %v1044 = vrcp.pop %v1040
    %v1045 = vrcp.pop %v1041
    %v1046 = vrcp.pop %v1042
    %v1047 = vrcp.pop %v1043
    %1048 = vst [vmem:[#allocation7] sm:$0xff] %v1044
    %1049 = vst [vmem:[#allocation7 + $0x8] sm:$0xff] %v1045
    %1050 = vst [vmem:[#allocation7 + $0x10] sm:$0xff] %v1046
    %1051 = vst [vmem:[#allocation7 + $0x18] sm:$0xff] %v1047
    // Predicated region
    $region58: #{tpu_custom_call.1} parent=1 // pred_check
      _
    $region59: #{tpu_custom_call.1} parent=1 // pred_check_branch
      %1053 = sbr.rel (0) target = $region61
    $region60: #{tpu_custom_call.1} parent=1 // pred_region
      %1055 = vsyncadd [#allocation6], 0
      %s1056 = sshll.u32 [#allocation7], 4
      %s1057 = int_to_ptr.vmem [resolvable:$true] %s1056
      %s1058 = sshll.u32 %s13, 4
      %s1059 = int_to_ptr.hbm [resolvable:$true] %s1058
      %1064 = dma.vmem_to_hbm [thread:$0]  %s1057, 512, %s1059, [#allocation6], 256, 256, 16
    $region61: #{tpu_custom_call.1} parent=1 // pred_fallthru
      _
    // Predicated region
    $region62: #{tpu_custom_call.1} parent=1 // pred_check
      _
    $region63: #{tpu_custom_call.1} parent=1 // pred_check_branch
      %1066 = sbr.rel (0) target = $region65
    $region64: #{tpu_custom_call.1} parent=1 // pred_region
      %1068 = dma.done [#allocation6], 512
    $region65: #{tpu_custom_call.1} parent=1 // pred_fallthru
      _
    %1069 = vsyncpa [#allocation5], 1
    %1070 = vsyncpa [#allocation6], 1

</llo_original>
